<compile_context>
chip_gen: v5e
topology: v5e:2x2
jax: 0.10.0
libtpu: 0.0.40
codegen_flags: <defaults>
</compile_context>

<pallas_src>
import functools
import math

import numpy as np
import jax
import jax.numpy as jnp
from jax.experimental import pallas as pl
from jax.experimental.pallas import tpu as pltpu

# ----------------------------------------------------------------------------
# Synthetic deterministic taxonomy (stands in for BuildDictionaries / CSV).
# ----------------------------------------------------------------------------
N_ORDERS, N_FAMILIES, N_GENERA, N_SPECIES = 2, 4, 8, 16
PIQUETS = [
    0,
    N_ORDERS,
    N_ORDERS + N_FAMILIES,
    N_ORDERS + N_FAMILIES + N_GENERA,
    N_ORDERS + N_FAMILIES + N_GENERA + N_SPECIES,
]  # == [0, 2, 6, 14, 30]
N_TOTAL = PIQUETS[-1]
NB_LEVELS = len(PIQUETS) - 1
WEIGHTS = [0.25, 0.25, 0.15, 0.1]


def build_h_matrix():
    """Build_H_Matrix equivalent: H[parent_global][child_global] = 1."""
    H = np.zeros((N_TOTAL, N_TOTAL), dtype=np.float32)
    for f in range(N_FAMILIES):
        H[f // 2, PIQUETS[1] + f] = 1.0
    for g in range(N_GENERA):
        H[PIQUETS[1] + g // 2, PIQUETS[2] + g] = 1.0
    for s in range(N_SPECIES):
        H[PIQUETS[2] + s // 2, PIQUETS[3] + s] = 1.0
    return H


def build_ancestor_table(H_np):
    """Vectorised get_grandparents: (N_SPECIES, NB_LEVELS) *global* class column
    of every ancestor level for each species.  Runs ONCE at module-init time."""
    parent_of = np.argmax(H_np, axis=0)            # first row j with H[j, c] == 1
    table = np.zeros((N_SPECIES, NB_LEVELS), dtype=np.int32)
    for s in range(N_SPECIES):
        gid = s + PIQUETS[-2]                      # original does y_true += piquets[-2]
        chain = [gid]
        for _ in range(NB_LEVELS - 1):
            gid = int(parent_of[gid])
            chain.append(gid)
        table[s, :] = chain[::-1]                  # order, family, genus, species (global)
    return table


def build_parent_of(H_np):
    """parent_of[c] = row j with H[j, c] == 1, or -1 if the column has no parent.
    Since every column of H has at most one 1, H[p][c] == 0 <=> parent_of[c] != p."""
    has_parent = H_np.max(axis=0) > 0.5
    parent = np.where(has_parent, np.argmax(H_np, axis=0), -1).astype(np.float32)
    return parent.reshape(N_TOTAL, 1)              # column vector: sublane axis


# ----------------------------------------------------------------------------
# Pallas kernel: per-batch-tile per-sample weighted loss terms.
#   y_pred_ref : (C_total, TB)  -- classes on sublanes, samples on lanes
#   targets_ref: (NB_LEVELS, TB) int32 global target column per level
#   parent_ref : (N_TOTAL, 1)   f32 parent_of table (-1 sentinel)
#   out_ref    : (1, TB)        f32 per-sample weighted loss (padded samples -> 0)
# ----------------------------------------------------------------------------
def taxanet_loss_kernel(y_pred_ref, targets_ref, parent_ref, out_ref, *,
                        true_batch, tile_cols):
    C, TB = y_pred_ref.shape

    x = y_pred_ref[...].astype(jnp.float32)        # cast after load (input may be bf16)

    # One iota per shape, reused (JAX does not CSE broadcast_in_dim).
    row = jax.lax.broadcasted_iota(jnp.int32, (C, TB), 0)    # class index (sublanes)
    lane = jax.lax.broadcasted_iota(jnp.int32, (1, TB), 1)   # sample index within tile

    neg_inf = jnp.float32(-jnp.inf)
    zero = jnp.float32(0.0)
    e = jnp.float32(math.e)
    inv_b = jnp.float32(1.0 / float(true_batch))

    # parent_of table broadcast across lanes once (hoisted out of the level loop).
    pof = jnp.broadcast_to(parent_ref[...], (C, TB))          # (C, TB)

    def level_stats(k):
        lo, hi = PIQUETS[k], PIQUETS[k + 1]
        in_k = (row >= lo) & (row < hi)                        # (C, TB) static mask
        xm = jnp.where(in_k, x, neg_inf)                       # reused for max AND exp
        m_k = jnp.max(xm, axis=0, keepdims=True)               # (1, TB)
        # first-max argmax, *local* index within the level (torch.argmax tie rule)
        is_max = in_k & (x >= m_k)
        a_k = jnp.min(jnp.where(is_max, row - lo, C), axis=0, keepdims=True)
        return xm, m_k, a_k

    # Level 0: only the argmax survives (its CE is computed-and-discarded in PyTorch).
    _, _, a_prev = level_stats(0)

    per_sample = jnp.zeros((1, TB), jnp.float32)
    for k in range(1, NB_LEVELS):
        xm, m_k, a_k = level_stats(k)

        # softmax cross-entropy over this level (nn.CrossEntropyLoss); the mean over
        # the *full* (unpadded) batch is folded in via inv_b so tiles simply sum.
        # exp(-inf) == 0, so masked-out classes contribute nothing to the sum.
        s_k = jnp.sum(jnp.exp(xm - m_k), axis=0, keepdims=True)           # (1, TB)
        lse_k = jnp.log(s_k) + m_k
        t_k = targets_ref[k:k + 1, :]                                     # global col id
        tgt_k = jnp.sum(jnp.where(row == t_k, x, zero), axis=0, keepdims=True)
        ce_k = (lse_k - tgt_k) * inv_b

        # hierarchy consistency penalty: e whenever H[p_local][c_local] == 0,
        # i.e. parent_of[c_local] != p_local (local argmax ids on purpose --
        # reproduces the original module's indexing).  30-lane... 30-sublane gather,
        # no MXU, no 900-wide flat compare.
        pval = jnp.sum(jnp.where(row == a_k, pof, zero), axis=0, keepdims=True)
        pen_k = jnp.where(pval != a_prev.astype(jnp.float32), e, zero)

        per_sample = per_sample + jnp.float32(WEIGHTS[k]) * (pen_k + ce_k)
        a_prev = a_k

    # Zero out padded samples (batch padded up to a multiple of the tile width).
    gcol = pl.program_id(0) * tile_cols + lane
    per_sample = jnp.where(gcol < true_batch, per_sample, zero)

    out_ref[...] = per_sample


# ----------------------------------------------------------------------------
# Wrapper ("module"): init-time precompute + pallas_call forward.
# ----------------------------------------------------------------------------
def make_taxanet_loss(H_np, *, max_tile_cols=2048):
    """TaxaNetLoss.__init__ equivalent: precompute the ancestor table and the
    parent_of table once; returns the forward (loss) function."""
    assert max_tile_cols % 128 == 0
    # parent_of equivalence requires each column to have at most one parent (true
    # for any Build_H_Matrix output: every child has exactly one parent).
    assert (H_np.sum(axis=0) <= 1.0 + 1e-6).all()

    table = jnp.asarray(build_ancestor_table(H_np))                 # (16, 4) int32
    parent_col = jnp.asarray(build_parent_of(H_np))                 # (30, 1) f32

    def loss_fn(y_pred, y_true):
        batch, c_total = y_pred.shape
        assert c_total == N_TOTAL

        # vectorised get_grandparents: one gather, no per-sample python loop
        targets = jnp.take(table, y_true.astype(jnp.int32), axis=0)  # (B, 4)

        # Transposed layout: classes on sublanes, batch on lanes (lane-dense).
        y_pred_t = jnp.transpose(y_pred)                              # (30, B)
        targets_t = jnp.transpose(targets)                            # (4, B)

        if batch <= max_tile_cols:
            tb = batch                     # single tile: block dim == full dim
            padded = batch
        else:
            tb = max_tile_cols             # multiple of 128 -> lane-aligned blocks
            padded = ((batch + tb - 1) // tb) * tb

        if padded != batch:
            pad = padded - batch
            y_pred_t = jnp.pad(y_pred_t, ((0, 0), (0, pad)))
            targets_t = jnp.pad(targets_t, ((0, 0), (0, pad)))

        grid = (padded // tb,)
        kernel = functools.partial(taxanet_loss_kernel,
                                   true_batch=batch, tile_cols=tb)

        per_sample = pl.pallas_call(
            kernel,
            out_shape=jax.ShapeDtypeStruct((1, padded), jnp.float32),
            grid=grid,
            in_specs=[
                pl.BlockSpec((N_TOTAL, tb), lambda i: (0, i)),    # y_pred (transposed)
                pl.BlockSpec((NB_LEVELS, tb), lambda i: (0, i)),  # global target columns
                pl.BlockSpec((N_TOTAL, 1), lambda i: (0, 0)),     # parent_of (resident)
            ],
            out_specs=pl.BlockSpec((1, tb), lambda i: (0, i)),    # disjoint per-tile slice
            compiler_params=pltpu.CompilerParams(
                dimension_semantics=("parallel",)),               # megacore on v7x
        )(y_pred_t, targets_t, parent_col)

        # Padded samples were masked to 0 in-kernel; the mean-over-batch is already
        # folded in via 1/true_batch, so a plain sum gives the loss.
        return jnp.sum(per_sample)

    return loss_fn


# ----------------------------------------------------------------------------
# Pure-numpy reference (mirrors the PyTorch forward exactly).
# ----------------------------------------------------------------------------
def reference_loss_np(y_pred, y_true, H):
    B = y_pred.shape[0]
    levels_pred = [y_pred[:, PIQUETS[k]:PIQUETS[k + 1]] for k in range(NB_LEVELS)]

    levels_true = np.zeros((NB_LEVELS, B), dtype=np.int64)
    for b in range(B):
        gid = int(y_true[b]) + PIQUETS[-2]
        chain = [gid]
        for _ in range(NB_LEVELS - 1):
            gid = int(np.argmax(H[:, gid]))
            chain.append(gid)
        chain = chain[::-1]
        for k in range(NB_LEVELS):
            levels_true[k, b] = chain[k] - PIQUETS[k]

    def ce(logits, t):
        m = logits.max(axis=1, keepdims=True)
        lse = np.log(np.exp(logits - m).sum(axis=1, keepdims=True)) + m
        tl = logits[np.arange(B), t][:, None]
        return float(np.mean(lse - tl))

    loss = 0.0
    for k in range(1, NB_LEVELS):
        s = 0.0
        for i in range(B):
            p = int(np.argmax(levels_pred[k - 1][i]))
            c = int(np.argmax(levels_pred[k][i]))
            s += (H[p, c] == 0) * np.e
        s += ce(levels_pred[k], levels_true[k])
        loss += WEIGHTS[k] * s
    return loss


if __name__ == "__main__":
    key = jax.random.PRNGKey(0)
    k1, k2 = jax.random.split(key)

    B = 8
    y_pred = jax.random.normal(k1, (B, N_TOTAL), dtype=jnp.float32)
    y_true = jax.random.randint(k2, (B,), 0, N_SPECIES, dtype=jnp.int32)

    H_np = build_h_matrix()

    loss_fn = make_taxanet_loss(H_np)
    loss = jax.block_until_ready(loss_fn(y_pred, y_true))

    ref = reference_loss_np(np.asarray(y_pred, dtype=np.float32),
                            np.asarray(y_true), H_np)
    assert abs(float(loss) - ref) < 1e-3 * max(1.0, abs(ref)), (float(loss), ref)

    print("KERNEL_OK")
</pallas_src>

<mosaic_0001>
module attributes {stable_mosaic.version = 11 : i64} {
  func.func @taxanet_loss_kernel(%arg0: i32, %arg1: memref<30x8xf32, #tpu.memory_space<vmem>>, %arg2: memref<4x8xi32, #tpu.memory_space<vmem>>, %arg3: memref<30x1xf32, #tpu.memory_space<vmem>>, %arg4: memref<1x8xf32, #tpu.memory_space<vmem>>) attributes {dimension_semantics = [#tpu.dimension_semantics<parallel>], iteration_bounds = array<i64: 1>, scalar_prefetch = 0 : i64, scratch_operands = 0 : i64, tpu.core_type = #tpu.core_type<tc>, window_params = [{transform_indices = @transform_0, window_bounds = array<i64: 30, 8>}, {transform_indices = @transform_1, window_bounds = array<i64: 4, 8>}, {pipeline_mode = #tpu.pipeline_mode<synchronous>, transform_indices = @transform_2, window_bounds = array<i64: 30, 1>}, {transform_indices = @transform_3, window_bounds = array<i64: 1, 8>}]} {
    %c0 = arith.constant 0 : index
    %c0_0 = arith.constant 0 : index
    %0 = vector.load %arg1[%c0, %c0_0] : memref<30x8xf32, #tpu.memory_space<vmem>>, vector<30x8xf32>
    %1 = tpu.iota {dimensions = array<i32: 0>} : vector<30x8xi32>
    %2 = tpu.iota {dimensions = array<i32: 1>} : vector<1x8xi32>
    %c0_1 = arith.constant 0 : index
    %c0_2 = arith.constant 0 : index
    %3 = vector.load %arg3[%c0_1, %c0_2] : memref<30x1xf32, #tpu.memory_space<vmem>>, vector<30x1xf32>
    %4 = vector.shape_cast %3 : vector<30x1xf32> to vector<30x1xf32>
    %5 = vector.broadcast %4 : vector<30x1xf32> to vector<30x8xf32>
    %c0_i32 = arith.constant 0 : i32
    %6 = vector.broadcast %c0_i32 : i32 to vector<30x8xi32>
    %7 = arith.cmpi sge, %1, %6 : vector<30x8xi32>
    %c2_i32 = arith.constant 2 : i32
    %8 = vector.broadcast %c2_i32 : i32 to vector<30x8xi32>
    %9 = arith.cmpi slt, %1, %8 : vector<30x8xi32>
    %10 = arith.andi %7, %9 : vector<30x8xi1>
    %cst = arith.constant 0xFF800000 : f32
    %11 = vector.broadcast %cst : f32 to vector<30x8xf32>
    %12 = arith.select %10, %0, %11 : vector<30x8xi1>, vector<30x8xf32>
    %cst_3 = arith.constant dense<0xFF800000> : vector<8xf32>
    %13 = vector.multi_reduction <maximumf>, %12, %cst_3 [0] : vector<30x8xf32> to vector<8xf32>
    %14 = vector.shape_cast %13 : vector<8xf32> to vector<1x8xf32>
    %15 = vector.broadcast %14 : vector<1x8xf32> to vector<30x8xf32>
    %16 = arith.cmpf oge, %0, %15 : vector<30x8xf32>
    %17 = arith.andi %10, %16 : vector<30x8xi1>
    %c0_i32_4 = arith.constant 0 : i32
    %18 = vector.broadcast %c0_i32_4 : i32 to vector<30x8xi32>
    %19 = arith.subi %1, %18 : vector<30x8xi32>
    %c30_i32 = arith.constant 30 : i32
    %20 = vector.broadcast %c30_i32 : i32 to vector<30x8xi32>
    %21 = arith.select %17, %19, %20 : vector<30x8xi1>, vector<30x8xi32>
    %cst_5 = arith.constant dense<2147483647> : vector<8xi32>
    %22 = vector.multi_reduction <minsi>, %21, %cst_5 [0] : vector<30x8xi32> to vector<8xi32>
    %23 = vector.shape_cast %22 : vector<8xi32> to vector<1x8xi32>
    %cst_6 = arith.constant 0.000000e+00 : f32
    %24 = vector.broadcast %cst_6 : f32 to vector<1x8xf32>
    %c2_i32_7 = arith.constant 2 : i32
    %25 = vector.broadcast %c2_i32_7 : i32 to vector<30x8xi32>
    %26 = arith.cmpi sge, %1, %25 : vector<30x8xi32>
    %c6_i32 = arith.constant 6 : i32
    %27 = vector.broadcast %c6_i32 : i32 to vector<30x8xi32>
    %28 = arith.cmpi slt, %1, %27 : vector<30x8xi32>
    %29 = arith.andi %26, %28 : vector<30x8xi1>
    %cst_8 = arith.constant 0xFF800000 : f32
    %30 = vector.broadcast %cst_8 : f32 to vector<30x8xf32>
    %31 = arith.select %29, %0, %30 : vector<30x8xi1>, vector<30x8xf32>
    %cst_9 = arith.constant dense<0xFF800000> : vector<8xf32>
    %32 = vector.multi_reduction <maximumf>, %31, %cst_9 [0] : vector<30x8xf32> to vector<8xf32>
    %33 = vector.shape_cast %32 : vector<8xf32> to vector<1x8xf32>
    %34 = vector.broadcast %33 : vector<1x8xf32> to vector<30x8xf32>
    %35 = arith.cmpf oge, %0, %34 : vector<30x8xf32>
    %36 = arith.andi %29, %35 : vector<30x8xi1>
    %c2_i32_10 = arith.constant 2 : i32
    %37 = vector.broadcast %c2_i32_10 : i32 to vector<30x8xi32>
    %38 = arith.subi %1, %37 : vector<30x8xi32>
    %c30_i32_11 = arith.constant 30 : i32
    %39 = vector.broadcast %c30_i32_11 : i32 to vector<30x8xi32>
    %40 = arith.select %36, %38, %39 : vector<30x8xi1>, vector<30x8xi32>
    %cst_12 = arith.constant dense<2147483647> : vector<8xi32>
    %41 = vector.multi_reduction <minsi>, %40, %cst_12 [0] : vector<30x8xi32> to vector<8xi32>
    %42 = vector.shape_cast %41 : vector<8xi32> to vector<1x8xi32>
    %43 = vector.broadcast %33 : vector<1x8xf32> to vector<30x8xf32>
    %44 = arith.subf %31, %43 : vector<30x8xf32>
    %45 = math.exp %44 : vector<30x8xf32>
    %cst_13 = arith.constant dense<0.000000e+00> : vector<8xf32>
    %46 = vector.multi_reduction <add>, %45, %cst_13 [0] : vector<30x8xf32> to vector<8xf32>
    %47 = vector.shape_cast %46 : vector<8xf32> to vector<1x8xf32>
    %48 = math.log %47 : vector<1x8xf32>
    %49 = arith.addf %48, %33 : vector<1x8xf32>
    %c1 = arith.constant 1 : index
    %c0_14 = arith.constant 0 : index
    %50 = vector.load %arg2[%c1, %c0_14] : memref<4x8xi32, #tpu.memory_space<vmem>>, vector<1x8xi32>
    %51 = vector.broadcast %50 : vector<1x8xi32> to vector<30x8xi32>
    %52 = arith.cmpi eq, %1, %51 : vector<30x8xi32>
    %cst_15 = arith.constant 0.000000e+00 : f32
    %53 = vector.broadcast %cst_15 : f32 to vector<30x8xf32>
    %54 = arith.select %52, %0, %53 : vector<30x8xi1>, vector<30x8xf32>
    %cst_16 = arith.constant dense<0.000000e+00> : vector<8xf32>
    %55 = vector.multi_reduction <add>, %54, %cst_16 [0] : vector<30x8xf32> to vector<8xf32>
    %56 = vector.shape_cast %55 : vector<8xf32> to vector<1x8xf32>
    %57 = arith.subf %49, %56 : vector<1x8xf32>
    %cst_17 = arith.constant 1.250000e-01 : f32
    %58 = vector.broadcast %cst_17 : f32 to vector<1x8xf32>
    %59 = arith.mulf %57, %58 : vector<1x8xf32>
    %60 = vector.broadcast %42 : vector<1x8xi32> to vector<30x8xi32>
    %61 = arith.cmpi eq, %1, %60 : vector<30x8xi32>
    %cst_18 = arith.constant 0.000000e+00 : f32
    %62 = vector.broadcast %cst_18 : f32 to vector<30x8xf32>
    %63 = arith.select %61, %5, %62 : vector<30x8xi1>, vector<30x8xf32>
    %cst_19 = arith.constant dense<0.000000e+00> : vector<8xf32>
    %64 = vector.multi_reduction <add>, %63, %cst_19 [0] : vector<30x8xf32> to vector<8xf32>
    %65 = vector.shape_cast %64 : vector<8xf32> to vector<1x8xf32>
    %66 = arith.sitofp %23 : vector<1x8xi32> to vector<1x8xf32>
    %67 = arith.cmpf one, %65, %66 : vector<1x8xf32>
    %cst_20 = arith.constant 2.71828175 : f32
    %cst_21 = arith.constant 0.000000e+00 : f32
    %68 = vector.broadcast %cst_20 : f32 to vector<1x8xf32>
    %69 = vector.broadcast %cst_21 : f32 to vector<1x8xf32>
    %70 = arith.select %67, %68, %69 : vector<1x8xi1>, vector<1x8xf32>
    %71 = arith.addf %70, %59 : vector<1x8xf32>
    %cst_22 = arith.constant 2.500000e-01 : f32
    %72 = vector.broadcast %cst_22 : f32 to vector<1x8xf32>
    %73 = arith.mulf %72, %71 : vector<1x8xf32>
    %74 = arith.addf %24, %73 : vector<1x8xf32>
    %c6_i32_23 = arith.constant 6 : i32
    %75 = vector.broadcast %c6_i32_23 : i32 to vector<30x8xi32>
    %76 = arith.cmpi sge, %1, %75 : vector<30x8xi32>
    %c14_i32 = arith.constant 14 : i32
    %77 = vector.broadcast %c14_i32 : i32 to vector<30x8xi32>
    %78 = arith.cmpi slt, %1, %77 : vector<30x8xi32>
    %79 = arith.andi %76, %78 : vector<30x8xi1>
    %cst_24 = arith.constant 0xFF800000 : f32
    %80 = vector.broadcast %cst_24 : f32 to vector<30x8xf32>
    %81 = arith.select %79, %0, %80 : vector<30x8xi1>, vector<30x8xf32>
    %cst_25 = arith.constant dense<0xFF800000> : vector<8xf32>
    %82 = vector.multi_reduction <maximumf>, %81, %cst_25 [0] : vector<30x8xf32> to vector<8xf32>
    %83 = vector.shape_cast %82 : vector<8xf32> to vector<1x8xf32>
    %84 = vector.broadcast %83 : vector<1x8xf32> to vector<30x8xf32>
    %85 = arith.cmpf oge, %0, %84 : vector<30x8xf32>
    %86 = arith.andi %79, %85 : vector<30x8xi1>
    %c6_i32_26 = arith.constant 6 : i32
    %87 = vector.broadcast %c6_i32_26 : i32 to vector<30x8xi32>
    %88 = arith.subi %1, %87 : vector<30x8xi32>
    %c30_i32_27 = arith.constant 30 : i32
    %89 = vector.broadcast %c30_i32_27 : i32 to vector<30x8xi32>
    %90 = arith.select %86, %88, %89 : vector<30x8xi1>, vector<30x8xi32>
    %cst_28 = arith.constant dense<2147483647> : vector<8xi32>
    %91 = vector.multi_reduction <minsi>, %90, %cst_28 [0] : vector<30x8xi32> to vector<8xi32>
    %92 = vector.shape_cast %91 : vector<8xi32> to vector<1x8xi32>
    %93 = vector.broadcast %83 : vector<1x8xf32> to vector<30x8xf32>
    %94 = arith.subf %81, %93 : vector<30x8xf32>
    %95 = math.exp %94 : vector<30x8xf32>
    %cst_29 = arith.constant dense<0.000000e+00> : vector<8xf32>
    %96 = vector.multi_reduction <add>, %95, %cst_29 [0] : vector<30x8xf32> to vector<8xf32>
    %97 = vector.shape_cast %96 : vector<8xf32> to vector<1x8xf32>
    %98 = math.log %97 : vector<1x8xf32>
    %99 = arith.addf %98, %83 : vector<1x8xf32>
    %c2 = arith.constant 2 : index
    %c0_30 = arith.constant 0 : index
    %100 = vector.load %arg2[%c2, %c0_30] : memref<4x8xi32, #tpu.memory_space<vmem>>, vector<1x8xi32>
    %101 = vector.broadcast %100 : vector<1x8xi32> to vector<30x8xi32>
    %102 = arith.cmpi eq, %1, %101 : vector<30x8xi32>
    %cst_31 = arith.constant 0.000000e+00 : f32
    %103 = vector.broadcast %cst_31 : f32 to vector<30x8xf32>
    %104 = arith.select %102, %0, %103 : vector<30x8xi1>, vector<30x8xf32>
    %cst_32 = arith.constant dense<0.000000e+00> : vector<8xf32>
    %105 = vector.multi_reduction <add>, %104, %cst_32 [0] : vector<30x8xf32> to vector<8xf32>
    %106 = vector.shape_cast %105 : vector<8xf32> to vector<1x8xf32>
    %107 = arith.subf %99, %106 : vector<1x8xf32>
    %cst_33 = arith.constant 1.250000e-01 : f32
    %108 = vector.broadcast %cst_33 : f32 to vector<1x8xf32>
    %109 = arith.mulf %107, %108 : vector<1x8xf32>
    %110 = vector.broadcast %92 : vector<1x8xi32> to vector<30x8xi32>
    %111 = arith.cmpi eq, %1, %110 : vector<30x8xi32>
    %cst_34 = arith.constant 0.000000e+00 : f32
    %112 = vector.broadcast %cst_34 : f32 to vector<30x8xf32>
    %113 = arith.select %111, %5, %112 : vector<30x8xi1>, vector<30x8xf32>
    %cst_35 = arith.constant dense<0.000000e+00> : vector<8xf32>
    %114 = vector.multi_reduction <add>, %113, %cst_35 [0] : vector<30x8xf32> to vector<8xf32>
    %115 = vector.shape_cast %114 : vector<8xf32> to vector<1x8xf32>
    %116 = arith.sitofp %42 : vector<1x8xi32> to vector<1x8xf32>
    %117 = arith.cmpf one, %115, %116 : vector<1x8xf32>
    %cst_36 = arith.constant 2.71828175 : f32
    %cst_37 = arith.constant 0.000000e+00 : f32
    %118 = vector.broadcast %cst_36 : f32 to vector<1x8xf32>
    %119 = vector.broadcast %cst_37 : f32 to vector<1x8xf32>
    %120 = arith.select %117, %118, %119 : vector<1x8xi1>, vector<1x8xf32>
    %121 = arith.addf %120, %109 : vector<1x8xf32>
    %cst_38 = arith.constant 1.500000e-01 : f32
    %122 = vector.broadcast %cst_38 : f32 to vector<1x8xf32>
    %123 = arith.mulf %122, %121 : vector<1x8xf32>
    %124 = arith.addf %74, %123 : vector<1x8xf32>
    %c14_i32_39 = arith.constant 14 : i32
    %125 = vector.broadcast %c14_i32_39 : i32 to vector<30x8xi32>
    %126 = arith.cmpi sge, %1, %125 : vector<30x8xi32>
    %c30_i32_40 = arith.constant 30 : i32
    %127 = vector.broadcast %c30_i32_40 : i32 to vector<30x8xi32>
    %128 = arith.cmpi slt, %1, %127 : vector<30x8xi32>
    %129 = arith.andi %126, %128 : vector<30x8xi1>
    %cst_41 = arith.constant 0xFF800000 : f32
    %130 = vector.broadcast %cst_41 : f32 to vector<30x8xf32>
    %131 = arith.select %129, %0, %130 : vector<30x8xi1>, vector<30x8xf32>
    %cst_42 = arith.constant dense<0xFF800000> : vector<8xf32>
    %132 = vector.multi_reduction <maximumf>, %131, %cst_42 [0] : vector<30x8xf32> to vector<8xf32>
    %133 = vector.shape_cast %132 : vector<8xf32> to vector<1x8xf32>
    %134 = vector.broadcast %133 : vector<1x8xf32> to vector<30x8xf32>
    %135 = arith.cmpf oge, %0, %134 : vector<30x8xf32>
    %136 = arith.andi %129, %135 : vector<30x8xi1>
    %c14_i32_43 = arith.constant 14 : i32
    %137 = vector.broadcast %c14_i32_43 : i32 to vector<30x8xi32>
    %138 = arith.subi %1, %137 : vector<30x8xi32>
    %c30_i32_44 = arith.constant 30 : i32
    %139 = vector.broadcast %c30_i32_44 : i32 to vector<30x8xi32>
    %140 = arith.select %136, %138, %139 : vector<30x8xi1>, vector<30x8xi32>
    %cst_45 = arith.constant dense<2147483647> : vector<8xi32>
    %141 = vector.multi_reduction <minsi>, %140, %cst_45 [0] : vector<30x8xi32> to vector<8xi32>
    %142 = vector.shape_cast %141 : vector<8xi32> to vector<1x8xi32>
    %143 = vector.broadcast %133 : vector<1x8xf32> to vector<30x8xf32>
    %144 = arith.subf %131, %143 : vector<30x8xf32>
    %145 = math.exp %144 : vector<30x8xf32>
    %cst_46 = arith.constant dense<0.000000e+00> : vector<8xf32>
    %146 = vector.multi_reduction <add>, %145, %cst_46 [0] : vector<30x8xf32> to vector<8xf32>
    %147 = vector.shape_cast %146 : vector<8xf32> to vector<1x8xf32>
    %148 = math.log %147 : vector<1x8xf32>
    %149 = arith.addf %148, %133 : vector<1x8xf32>
    %c3 = arith.constant 3 : index
    %c0_47 = arith.constant 0 : index
    %150 = vector.load %arg2[%c3, %c0_47] : memref<4x8xi32, #tpu.memory_space<vmem>>, vector<1x8xi32>
    %151 = vector.broadcast %150 : vector<1x8xi32> to vector<30x8xi32>
    %152 = arith.cmpi eq, %1, %151 : vector<30x8xi32>
    %cst_48 = arith.constant 0.000000e+00 : f32
    %153 = vector.broadcast %cst_48 : f32 to vector<30x8xf32>
    %154 = arith.select %152, %0, %153 : vector<30x8xi1>, vector<30x8xf32>
    %cst_49 = arith.constant dense<0.000000e+00> : vector<8xf32>
    %155 = vector.multi_reduction <add>, %154, %cst_49 [0] : vector<30x8xf32> to vector<8xf32>
    %156 = vector.shape_cast %155 : vector<8xf32> to vector<1x8xf32>
    %157 = arith.subf %149, %156 : vector<1x8xf32>
    %cst_50 = arith.constant 1.250000e-01 : f32
    %158 = vector.broadcast %cst_50 : f32 to vector<1x8xf32>
    %159 = arith.mulf %157, %158 : vector<1x8xf32>
    %160 = vector.broadcast %142 : vector<1x8xi32> to vector<30x8xi32>
    %161 = arith.cmpi eq, %1, %160 : vector<30x8xi32>
    %cst_51 = arith.constant 0.000000e+00 : f32
    %162 = vector.broadcast %cst_51 : f32 to vector<30x8xf32>
    %163 = arith.select %161, %5, %162 : vector<30x8xi1>, vector<30x8xf32>
    %cst_52 = arith.constant dense<0.000000e+00> : vector<8xf32>
    %164 = vector.multi_reduction <add>, %163, %cst_52 [0] : vector<30x8xf32> to vector<8xf32>
    %165 = vector.shape_cast %164 : vector<8xf32> to vector<1x8xf32>
    %166 = arith.sitofp %92 : vector<1x8xi32> to vector<1x8xf32>
    %167 = arith.cmpf one, %165, %166 : vector<1x8xf32>
    %cst_53 = arith.constant 2.71828175 : f32
    %cst_54 = arith.constant 0.000000e+00 : f32
    %168 = vector.broadcast %cst_53 : f32 to vector<1x8xf32>
    %169 = vector.broadcast %cst_54 : f32 to vector<1x8xf32>
    %170 = arith.select %167, %168, %169 : vector<1x8xi1>, vector<1x8xf32>
    %171 = arith.addf %170, %159 : vector<1x8xf32>
    %cst_55 = arith.constant 1.000000e-01 : f32
    %172 = vector.broadcast %cst_55 : f32 to vector<1x8xf32>
    %173 = arith.mulf %172, %171 : vector<1x8xf32>
    %174 = arith.addf %124, %173 : vector<1x8xf32>
    %c8_i32 = arith.constant 8 : i32
    %175 = arith.muli %arg0, %c8_i32 : i32
    %176 = vector.broadcast %175 : i32 to vector<1x8xi32>
    %177 = arith.addi %176, %2 : vector<1x8xi32>
    %c8_i32_56 = arith.constant 8 : i32
    %178 = vector.broadcast %c8_i32_56 : i32 to vector<1x8xi32>
    %179 = arith.cmpi slt, %177, %178 : vector<1x8xi32>
    %cst_57 = arith.constant 0.000000e+00 : f32
    %180 = vector.broadcast %cst_57 : f32 to vector<1x8xf32>
    %181 = arith.select %179, %174, %180 : vector<1x8xi1>, vector<1x8xf32>
    %c0_58 = arith.constant 0 : index
    %c0_59 = arith.constant 0 : index
    %182 = vector.load %arg4[%c0_58, %c0_59] : memref<1x8xf32, #tpu.memory_space<vmem>>, vector<1x8xf32>
    tpu.vector_store %arg4[%c0_58, %c0_59], %181 {strides = array<i32>} : memref<1x8xf32, #tpu.memory_space<vmem>>, vector<1x8xf32>,
    return
  }
  func.func @transform_0(%arg0: i32) -> (i32, i32) {
    %c0_i32 = arith.constant 0 : i32
    %c0_i32_0 = arith.constant 0 : i32
    return %c0_i32, %arg0 : i32, i32
  }
  func.func @transform_1(%arg0: i32) -> (i32, i32) {
    %c0_i32 = arith.constant 0 : i32
    %c0_i32_0 = arith.constant 0 : i32
    return %c0_i32, %arg0 : i32, i32
  }
  func.func @transform_2(%arg0: i32) -> (i32, i32) {
    %c0_i32 = arith.constant 0 : i32
    %c0_i32_0 = arith.constant 0 : i32
    %c0_i32_1 = arith.constant 0 : i32
    return %c0_i32, %c0_i32_0 : i32, i32
  }
  func.func @transform_3(%arg0: i32) -> (i32, i32) {
    %c0_i32 = arith.constant 0 : i32
    %c0_i32_0 = arith.constant 0 : i32
    return %c0_i32, %arg0 : i32, i32
  }
}

</mosaic_0001>

<llo_original>
// kernel: tpu_custom_call.1
$region0: #{tpu_custom_call.1}
  #allocation0 [shape = 'u32[]', space=smem, size = 0x4, offset = 0x4, fixed_abs, tag = 'smem constant byte address 0x4 - core index']
  #allocation1 [shape = 'u32[72,128]{1,0:T(1,128)}', space=vmem, size = 0x9000, scoped, tag = 'internal scratch']
  %s0 = inlined_call_operand.vmem [shape: f32[30,8], index: 0, kind: input, shape index: {}]
  %s1 = inlined_call_operand.vmem [shape: s32[4,8], index: 1, kind: input, shape index: {}]
  %s2 = inlined_call_operand.vmem [shape: f32[30,1], index: 2, kind: input, shape index: {}]
  %s3 = inlined_call_operand.hbm [shape: f32[1,8], index: 3, kind: output, shape index: {}]
  %s4 = sld [smem:[#allocation0]]
  $region22: #{tpu_custom_call.1} parent=0
    _
  %s6 = ssub.s32 1, %s4
  %s7 = scalar_select 0, %s6, %s4
  $region1: #{tpu_custom_call.1} parent=0
    #allocation2 [shape = 'u8[512]{0}', space=vmem, size = 0x400, scoped, tag = 'output window, operand 0, single buffered']
    #allocation3 [shape = 's32[1]{0}', space=sflag, size = 0x4, scoped, tag = 'scoped memory for tpu_custom_call.1']
    %8 = vsyncpa [#allocation3], 0
    // Predicated region
    $region2: #{tpu_custom_call.1} parent=1 // pred_check
      _
    $region3: #{tpu_custom_call.1} parent=1 // pred_check_branch
      %10 = sbr.rel (0) target = $region5
    $region4: #{tpu_custom_call.1} parent=1 // pred_region
      _
    $region5: #{tpu_custom_call.1} parent=1 // pred_fallthru
      _
    // Predicated region
    $region6: #{tpu_custom_call.1} parent=1 // pred_check
      _
    $region7: #{tpu_custom_call.1} parent=1 // pred_check_branch
      %12 = sbr.rel (0) target = $region9
    $region8: #{tpu_custom_call.1} parent=1 // pred_region
      _
    $region9: #{tpu_custom_call.1} parent=1 // pred_fallthru
      _
    // Predicated region
    $region10: #{tpu_custom_call.1} parent=1 // pred_check
      _
    $region11: #{tpu_custom_call.1} parent=1 // pred_check_branch
      %14 = sbr.rel (0) target = $region13
    $region12: #{tpu_custom_call.1} parent=1 // pred_region
      _
    $region13: #{tpu_custom_call.1} parent=1 // pred_fallthru
      _
    %v15 = vld [vmem:[%s0] sm:$0xff]
    %v16 = vld [vmem:[%s0 + $0x8] sm:$0xff]
    %v17 = vld [vmem:[%s0 + $0x10] sm:$0xff]
    %v18 = vld [vmem:[%s0 + $0x18] sm:$0x3f]
    %v19 = vlaneseq
    %v20 = vshrl.u32 %v19, 7
    %v21 = vadd.s32 %v20, 8
    %v22 = vadd.s32 %v20, 16
    %v23 = vadd.s32 %v20, 24
    %v24 = vlaneseq
    %v25 = vand.u32 %v24, 127
    %v26 = vld [vmem:[%s2] sm:$0xff]
    %v27 = vld [vmem:[%s2 + $0x8] sm:$0xff]
    %v28 = vld [vmem:[%s2 + $0x10] sm:$0xff]
    %v29 = vld [vmem:[%s2 + $0x18] sm:$0x3f]
    %31 = vset.pattern.permute.xlu0 0
    %32 = vperm.xlu0 %31, %v26
    %v33 = vpop.permute.xlu0 %32
    %36 = vset.pattern.permute.xlu0 0
    %37 = vperm.xlu0 %36, %v27
    %v38 = vpop.permute.xlu0 %37
    %41 = vset.pattern.permute.xlu0 0
    %42 = vperm.xlu0 %41, %v28
    %v43 = vpop.permute.xlu0 %42
    %46 = vset.pattern.permute.xlu0 0
    %47 = vperm.xlu0 %46, %v29
    %v48 = vpop.permute.xlu0 %47
    %vm50 = vcmp.ge.s32.totalorder %v20, 0
    %vm51 = vcmp.ge.s32.totalorder %v21, 0
    %vm52 = vcmp.ge.s32.totalorder %v22, 0
    %vm53 = vcmp.ge.s32.totalorder %v23, 0
    %vm54 = vcmp.lt.s32.totalorder %v20, 2
    %vm55 = vcmp.lt.s32.totalorder %v21, 2
    %vm56 = vcmp.lt.s32.totalorder %v22, 2
    %vm57 = vcmp.lt.s32.totalorder %v23, 2
    %vm58 = vmand %vm50, %vm54
    %vm59 = vmand %vm51, %vm55
    %vm60 = vmand %vm52, %vm56
    %vm61 = vmand %vm53, %vm57
    %v62 = vsel %vm58, %v15, -inf
    %v63 = vsel %vm59, %v16, -inf
    %v64 = vsel %vm60, %v17, -inf
    %v65 = vsel %vm61, %v18, -inf
    %vm66 = vcmask 64512
    %v67 = vsel %vm66, %v62, -inf
    %v68 = vsel %vm66, %v63, -inf
    %v69 = vsel %vm66, %v64, -inf
    %vm70 = vcmask 62464
    %v71 = vsel %vm70, %v65, -inf
    %v72 = vmax.f32 %v67, %v68
    %v73 = vmax.f32 %v69, %v71
    %v74 = vmax.f32 %v72, %v73
    %v75 = vrot.slane %v74, 4
    %v76 = vmax.f32 %v74, %v75
    %v77 = vrot.slane %v76, 2
    %v78 = vmax.f32 %v76, %v77
    %v79 = vrot.slane %v78, 1
    %v80 = vmax.f32 %v78, %v79
    %vm81 = vcmp.ge.f32.partialorder %v15, %v80
    %vm82 = vcmp.ge.f32.partialorder %v16, %v80
    %vm83 = vcmp.ge.f32.partialorder %v17, %v80
    %vm84 = vcmp.ge.f32.partialorder %v18, %v80
    %vm85 = vmand %vm58, %vm81
    %vm86 = vmand %vm59, %vm82
    %vm87 = vmand %vm60, %vm83
    %vm88 = vmand %vm61, %vm84
    %v89 = vsel %vm85, %v20, 30
    %v90 = vsel %vm86, %v21, 30
    %v91 = vsel %vm87, %v22, 30
    %v92 = vsel %vm88, %v23, 30
    %v93 = vsel %vm66, %v89, 2147483647
    %v94 = vsel %vm66, %v90, 2147483647
    %v95 = vsel %vm66, %v91, 2147483647
    %v96 = vsel %vm70, %v92, 2147483647
    %vm97 = vcmp.lt.s32.totalorder %v93, %v94
    %v98 = vsel %vm97, %v93, %v94
    %vm99 = vcmp.lt.s32.totalorder %v95, %v96
    %v100 = vsel %vm99, %v95, %v96
    %vm101 = vcmp.lt.s32.totalorder %v98, %v100
    %v102 = vsel %vm101, %v98, %v100
    %v103 = vrot.slane %v102, 4
    %vm104 = vcmp.lt.s32.totalorder %v102, %v103
    %v105 = vsel %vm104, %v102, %v103
    %v106 = vrot.slane %v105, 2
    %vm107 = vcmp.lt.s32.totalorder %v105, %v106
    %v108 = vsel %vm107, %v105, %v106
    %v109 = vrot.slane %v108, 1
    %vm110 = vcmp.lt.s32.totalorder %v108, %v109
    %v111 = vsel %vm110, %v108, %v109
    %vm112 = vcmp.ge.s32.totalorder %v20, 2
    %vm113 = vcmp.ge.s32.totalorder %v21, 2
    %vm114 = vcmp.ge.s32.totalorder %v22, 2
    %vm115 = vcmp.ge.s32.totalorder %v23, 2
    %vm116 = vcmp.lt.s32.totalorder %v20, 6
    %vm117 = vcmp.lt.s32.totalorder %v21, 6
    %vm118 = vcmp.lt.s32.totalorder %v22, 6
    %vm119 = vcmp.lt.s32.totalorder %v23, 6
    %vm120 = vmand %vm112, %vm116
    %vm121 = vmand %vm113, %vm117
    %vm122 = vmand %vm114, %vm118
    %vm123 = vmand %vm115, %vm119
    %v124 = vsel %vm120, %v15, -inf
    %v125 = vsel %vm121, %v16, -inf
    %v126 = vsel %vm122, %v17, -inf
    %v127 = vsel %vm123, %v18, -inf
    %v128 = vsel %vm66, %v124, -inf
    %v129 = vsel %vm66, %v125, -inf
    %v130 = vsel %vm66, %v126, -inf
    %v131 = vsel %vm70, %v127, -inf
    %v132 = vmax.f32 %v128, %v129
    %v133 = vmax.f32 %v130, %v131
    %v134 = vmax.f32 %v132, %v133
    %v135 = vrot.slane %v134, 4
    %v136 = vmax.f32 %v134, %v135
    %v137 = vrot.slane %v136, 2
    %v138 = vmax.f32 %v136, %v137
    %v139 = vrot.slane %v138, 1
    %v140 = vmax.f32 %v138, %v139
    %vm141 = vcmp.ge.f32.partialorder %v15, %v140
    %vm142 = vcmp.ge.f32.partialorder %v16, %v140
    %vm143 = vcmp.ge.f32.partialorder %v17, %v140
    %vm144 = vcmp.ge.f32.partialorder %v18, %v140
    %vm145 = vmand %vm120, %vm141
    %vm146 = vmand %vm121, %vm142
    %vm147 = vmand %vm122, %vm143
    %vm148 = vmand %vm123, %vm144
    %v149 = vsub.s32 %v20, 2
    %v150 = vsub.s32 %v21, 2
    %v151 = vsub.s32 %v22, 2
    %v152 = vsub.s32 %v23, 2
    %v153 = vsel %vm145, %v149, 30
    %v154 = vsel %vm146, %v150, 30
    %v155 = vsel %vm147, %v151, 30
    %v156 = vsel %vm148, %v152, 30
    %v157 = vsel %vm66, %v153, 2147483647
    %v158 = vsel %vm66, %v154, 2147483647
    %v159 = vsel %vm66, %v155, 2147483647
    %v160 = vsel %vm70, %v156, 2147483647
    %vm161 = vcmp.lt.s32.totalorder %v157, %v158
    %v162 = vsel %vm161, %v157, %v158
    %vm163 = vcmp.lt.s32.totalorder %v159, %v160
    %v164 = vsel %vm163, %v159, %v160
    %vm165 = vcmp.lt.s32.totalorder %v162, %v164
    %v166 = vsel %vm165, %v162, %v164
    %v167 = vrot.slane %v166, 4
    %vm168 = vcmp.lt.s32.totalorder %v166, %v167
    %v169 = vsel %vm168, %v166, %v167
    %v170 = vrot.slane %v169, 2
    %vm171 = vcmp.lt.s32.totalorder %v169, %v170
    %v172 = vsel %vm171, %v169, %v170
    %v173 = vrot.slane %v172, 1
    %vm174 = vcmp.lt.s32.totalorder %v172, %v173
    %v175 = vsel %vm174, %v172, %v173
    %v176 = vsub.f32 %v124, %v140
    %v177 = vsub.f32 %v125, %v140
    %v178 = vsub.f32 %v126, %v140
    %v179 = vsub.f32 %v127, %v140
    %v180 = vmul.f32 %v176, 1.442695
    %v181 = vpow.pop %v180
    %v182 = vmul.f32 %v177, 1.442695
    %v183 = vpow.pop %v182
    %v184 = vmul.f32 %v178, 1.442695
    %v185 = vpow.pop %v184
    %v186 = vmul.f32 %v179, 1.442695
    %v187 = vpow.pop %v186
    %v188 = vsel %vm66, %v181, 0.0
    %v189 = vsel %vm66, %v183, 0.0
    %v190 = vadd.f32 %v188, %v189
    %v191 = vsel %vm66, %v185, 0.0
    %v192 = vadd.f32 %v190, %v191
    %v193 = vsel %vm70, %v187, 0.0
    %v194 = vadd.f32 %v192, %v193
    %v195 = vrot.slane %v194, 4
    %v196 = vadd.f32 %v194, %v195
    %v197 = vrot.slane %v196, 2
    %v198 = vadd.f32 %v196, %v197
    %v199 = vrot.slane %v198, 1
    %v200 = vadd.f32 %v198, %v199
    %v201 = vlog2.pop %v200
    %v202 = vmul.f32 %v201, 0.6931472
    %v203 = vadd.f32 %v202, %v140
    %v204 = vld [vmem:[%s1 + $0x1] sm:$0x1]
    %v205 = vperm.slane %v204, 0
    %vm206 = vcmp.eq.s32.totalorder %v20, %v205
    %vm207 = vcmp.eq.s32.totalorder %v21, %v205
    %vm208 = vcmp.eq.s32.totalorder %v22, %v205
    %vm209 = vcmp.eq.s32.totalorder %v23, %v205
    %v210 = vsel %vm206, %v15, 0.0
    %v211 = vsel %vm207, %v16, 0.0
    %v212 = vsel %vm208, %v17, 0.0
    %v213 = vsel %vm209, %v18, 0.0
    %v214 = vsel %vm66, %v210, 0.0
    %v215 = vsel %vm66, %v211, 0.0
    %v216 = vadd.f32 %v214, %v215
    %v217 = vsel %vm66, %v212, 0.0
    %v218 = vadd.f32 %v216, %v217
    %v219 = vsel %vm70, %v213, 0.0
    %v220 = vadd.f32 %v218, %v219
    %v221 = vrot.slane %v220, 4
    %v222 = vadd.f32 %v220, %v221
    %v223 = vrot.slane %v222, 2
    %v224 = vadd.f32 %v222, %v223
    %v225 = vrot.slane %v224, 1
    %v226 = vadd.f32 %v224, %v225
    %v227 = vsub.f32 %v203, %v226
    %v228 = vmul.f32 %v227, 0.125
    %vm229 = vcmp.eq.s32.totalorder %v20, %v175
    %vm230 = vcmp.eq.s32.totalorder %v21, %v175
    %vm231 = vcmp.eq.s32.totalorder %v22, %v175
    %vm232 = vcmp.eq.s32.totalorder %v23, %v175
    %v233 = vsel %vm229, %v33, 0.0
    %v234 = vsel %vm230, %v38, 0.0
    %v235 = vsel %vm231, %v43, 0.0
    %v236 = vsel %vm232, %v48, 0.0
    %v237 = vsel %vm66, %v233, 0.0
    %v238 = vsel %vm66, %v234, 0.0
    %v239 = vadd.f32 %v237, %v238
    %v240 = vsel %vm66, %v235, 0.0
    %v241 = vadd.f32 %v239, %v240
    %v242 = vsel %vm70, %v236, 0.0
    %v243 = vadd.f32 %v241, %v242
    %v244 = vrot.slane %v243, 4
    %v245 = vadd.f32 %v243, %v244
    %v246 = vrot.slane %v245, 2
    %v247 = vadd.f32 %v245, %v246
    %v248 = vrot.slane %v247, 1
    %v249 = vadd.f32 %v247, %v248
    %v250 = vcvt.s32.f32 %v111
    %vm251 = vcmp.ne.f32.partialorder %v249, %v250
    %v252 = vsel %vm251, 2.7182817, 0.0
    %v253 = vadd.f32 %v252, %v228
    %v254 = vmul.f32 %v253, 0.25
    %v255 = vadd.f32 %v254, 0.0
    %vm256 = vcmp.ge.s32.totalorder %v20, 6
    %vm257 = vcmp.ge.s32.totalorder %v21, 6
    %vm258 = vcmp.ge.s32.totalorder %v22, 6
    %vm259 = vcmp.ge.s32.totalorder %v23, 6
    %vm260 = vcmp.lt.s32.totalorder %v20, 14
    %vm261 = vcmp.lt.s32.totalorder %v21, 14
    %vm262 = vcmp.lt.s32.totalorder %v22, 14
    %vm263 = vcmp.lt.s32.totalorder %v23, 14
    %vm264 = vmand %vm256, %vm260
    %vm265 = vmand %vm257, %vm261
    %vm266 = vmand %vm258, %vm262
    %vm267 = vmand %vm259, %vm263
    %v268 = vsel %vm264, %v15, -inf
    %v269 = vsel %vm265, %v16, -inf
    %v270 = vsel %vm266, %v17, -inf
    %v271 = vsel %vm267, %v18, -inf
    %v272 = vsel %vm66, %v268, -inf
    %v273 = vsel %vm66, %v269, -inf
    %v274 = vsel %vm66, %v270, -inf
    %v275 = vsel %vm70, %v271, -inf
    %v276 = vmax.f32 %v272, %v273
    %v277 = vmax.f32 %v274, %v275
    %v278 = vmax.f32 %v276, %v277
    %v279 = vrot.slane %v278, 4
    %v280 = vmax.f32 %v278, %v279
    %v281 = vrot.slane %v280, 2
    %v282 = vmax.f32 %v280, %v281
    %v283 = vrot.slane %v282, 1
    %v284 = vmax.f32 %v282, %v283
    %vm285 = vcmp.ge.f32.partialorder %v15, %v284
    %vm286 = vcmp.ge.f32.partialorder %v16, %v284
    %vm287 = vcmp.ge.f32.partialorder %v17, %v284
    %vm288 = vcmp.ge.f32.partialorder %v18, %v284
    %vm289 = vmand %vm264, %vm285
    %vm290 = vmand %vm265, %vm286
    %vm291 = vmand %vm266, %vm287
    %vm292 = vmand %vm267, %vm288
    %v293 = vsub.s32 %v20, 6
    %v294 = vsub.s32 %v21, 6
    %v295 = vsub.s32 %v22, 6
    %v296 = vsub.s32 %v23, 6
    %v297 = vsel %vm289, %v293, 30
    %v298 = vsel %vm290, %v294, 30
    %v299 = vsel %vm291, %v295, 30
    %v300 = vsel %vm292, %v296, 30
    %v301 = vsel %vm66, %v297, 2147483647
    %v302 = vsel %vm66, %v298, 2147483647
    %v303 = vsel %vm66, %v299, 2147483647
    %v304 = vsel %vm70, %v300, 2147483647
    %vm305 = vcmp.lt.s32.totalorder %v301, %v302
    %v306 = vsel %vm305, %v301, %v302
    %vm307 = vcmp.lt.s32.totalorder %v303, %v304
    %v308 = vsel %vm307, %v303, %v304
    %vm309 = vcmp.lt.s32.totalorder %v306, %v308
    %v310 = vsel %vm309, %v306, %v308
    %v311 = vrot.slane %v310, 4
    %vm312 = vcmp.lt.s32.totalorder %v310, %v311
    %v313 = vsel %vm312, %v310, %v311
    %v314 = vrot.slane %v313, 2
    %vm315 = vcmp.lt.s32.totalorder %v313, %v314
    %v316 = vsel %vm315, %v313, %v314
    %v317 = vrot.slane %v316, 1
    %vm318 = vcmp.lt.s32.totalorder %v316, %v317
    %v319 = vsel %vm318, %v316, %v317
    %v320 = vsub.f32 %v268, %v284
    %v321 = vsub.f32 %v269, %v284
    %v322 = vsub.f32 %v270, %v284
    %v323 = vsub.f32 %v271, %v284
    %v324 = vmul.f32 %v320, 1.442695
    %v325 = vpow.pop %v324
    %v326 = vmul.f32 %v321, 1.442695
    %v327 = vpow.pop %v326
    %v328 = vmul.f32 %v322, 1.442695
    %v329 = vpow.pop %v328
    %v330 = vmul.f32 %v323, 1.442695
    %v331 = vpow.pop %v330
    %v332 = vsel %vm66, %v325, 0.0
    %v333 = vsel %vm66, %v327, 0.0
    %v334 = vadd.f32 %v332, %v333
    %v335 = vsel %vm66, %v329, 0.0
    %v336 = vadd.f32 %v334, %v335
    %v337 = vsel %vm70, %v331, 0.0
    %v338 = vadd.f32 %v336, %v337
    %v339 = vrot.slane %v338, 4
    %v340 = vadd.f32 %v338, %v339
    %v341 = vrot.slane %v340, 2
    %v342 = vadd.f32 %v340, %v341
    %v343 = vrot.slane %v342, 1
    %v344 = vadd.f32 %v342, %v343
    %v345 = vlog2.pop %v344
    %v346 = vmul.f32 %v345, 0.6931472
    %v347 = vadd.f32 %v346, %v284
    %v348 = vld [vmem:[%s1 + $0x2] sm:$0x1]
    %v349 = vperm.slane %v348, 0
    %vm350 = vcmp.eq.s32.totalorder %v20, %v349
    %vm351 = vcmp.eq.s32.totalorder %v21, %v349
    %vm352 = vcmp.eq.s32.totalorder %v22, %v349
    %vm353 = vcmp.eq.s32.totalorder %v23, %v349
    %v354 = vsel %vm350, %v15, 0.0
    %v355 = vsel %vm351, %v16, 0.0
    %v356 = vsel %vm352, %v17, 0.0
    %v357 = vsel %vm353, %v18, 0.0
    %v358 = vsel %vm66, %v354, 0.0
    %v359 = vsel %vm66, %v355, 0.0
    %v360 = vadd.f32 %v358, %v359
    %v361 = vsel %vm66, %v356, 0.0
    %v362 = vadd.f32 %v360, %v361
    %v363 = vsel %vm70, %v357, 0.0
    %v364 = vadd.f32 %v362, %v363
    %v365 = vrot.slane %v364, 4
    %v366 = vadd.f32 %v364, %v365
    %v367 = vrot.slane %v366, 2
    %v368 = vadd.f32 %v366, %v367
    %v369 = vrot.slane %v368, 1
    %v370 = vadd.f32 %v368, %v369
    %v371 = vsub.f32 %v347, %v370
    %v372 = vmul.f32 %v371, 0.125
    %vm373 = vcmp.eq.s32.totalorder %v20, %v319
    %vm374 = vcmp.eq.s32.totalorder %v21, %v319
    %vm375 = vcmp.eq.s32.totalorder %v22, %v319
    %vm376 = vcmp.eq.s32.totalorder %v23, %v319
    %v377 = vsel %vm373, %v33, 0.0
    %v378 = vsel %vm374, %v38, 0.0
    %v379 = vsel %vm375, %v43, 0.0
    %v380 = vsel %vm376, %v48, 0.0
    %v381 = vsel %vm66, %v377, 0.0
    %v382 = vsel %vm66, %v378, 0.0
    %v383 = vadd.f32 %v381, %v382
    %v384 = vsel %vm66, %v379, 0.0
    %v385 = vadd.f32 %v383, %v384
    %v386 = vsel %vm70, %v380, 0.0
    %v387 = vadd.f32 %v385, %v386
    %v388 = vrot.slane %v387, 4
    %v389 = vadd.f32 %v387, %v388
    %v390 = vrot.slane %v389, 2
    %v391 = vadd.f32 %v389, %v390
    %v392 = vrot.slane %v391, 1
    %v393 = vadd.f32 %v391, %v392
    %v394 = vcvt.s32.f32 %v175
    %vm395 = vcmp.ne.f32.partialorder %v393, %v394
    %v396 = vsel %vm395, 2.7182817, 0.0
    %v397 = vadd.f32 %v396, %v372
    %v398 = vmul.f32 %v397, 0.15
    %v399 = vadd.f32 %v255, %v398
    %vm400 = vcmp.ge.s32.totalorder %v20, 14
    %vm401 = vcmp.ge.s32.totalorder %v21, 14
    %vm402 = vcmp.ge.s32.totalorder %v22, 14
    %vm403 = vcmp.ge.s32.totalorder %v23, 14
    %vm404 = vcmp.lt.s32.totalorder %v20, 30
    %vm405 = vcmp.lt.s32.totalorder %v21, 30
    %vm406 = vcmp.lt.s32.totalorder %v22, 30
    %vm407 = vcmp.lt.s32.totalorder %v23, 30
    %vm408 = vmand %vm400, %vm404
    %vm409 = vmand %vm401, %vm405
    %vm410 = vmand %vm402, %vm406
    %vm411 = vmand %vm403, %vm407
    %v412 = vsel %vm408, %v15, -inf
    %v413 = vsel %vm409, %v16, -inf
    %v414 = vsel %vm410, %v17, -inf
    %v415 = vsel %vm411, %v18, -inf
    %v416 = vsel %vm66, %v412, -inf
    %v417 = vsel %vm66, %v413, -inf
    %v418 = vsel %vm66, %v414, -inf
    %v419 = vsel %vm70, %v415, -inf
    %v420 = vmax.f32 %v416, %v417
    %v421 = vmax.f32 %v418, %v419
    %v422 = vmax.f32 %v420, %v421
    %v423 = vrot.slane %v422, 4
    %v424 = vmax.f32 %v422, %v423
    %v425 = vrot.slane %v424, 2
    %v426 = vmax.f32 %v424, %v425
    %v427 = vrot.slane %v426, 1
    %v428 = vmax.f32 %v426, %v427
    %vm429 = vcmp.ge.f32.partialorder %v15, %v428
    %vm430 = vcmp.ge.f32.partialorder %v16, %v428
    %vm431 = vcmp.ge.f32.partialorder %v17, %v428
    %vm432 = vcmp.ge.f32.partialorder %v18, %v428
    %vm433 = vmand %vm408, %vm429
    %vm434 = vmand %vm409, %vm430
    %vm435 = vmand %vm410, %vm431
    %vm436 = vmand %vm411, %vm432
    %v437 = vsub.s32 %v20, 14
    %v438 = vsub.s32 %v21, 14
    %v439 = vsub.s32 %v22, 14
    %v440 = vsub.s32 %v23, 14
    %v441 = vsel %vm433, %v437, 30
    %v442 = vsel %vm434, %v438, 30
    %v443 = vsel %vm435, %v439, 30
    %v444 = vsel %vm436, %v440, 30
    %v445 = vsel %vm66, %v441, 2147483647
    %v446 = vsel %vm66, %v442, 2147483647
    %v447 = vsel %vm66, %v443, 2147483647
    %v448 = vsel %vm70, %v444, 2147483647
    %vm449 = vcmp.lt.s32.totalorder %v445, %v446
    %v450 = vsel %vm449, %v445, %v446
    %vm451 = vcmp.lt.s32.totalorder %v447, %v448
    %v452 = vsel %vm451, %v447, %v448
    %vm453 = vcmp.lt.s32.totalorder %v450, %v452
    %v454 = vsel %vm453, %v450, %v452
    %v455 = vrot.slane %v454, 4
    %vm456 = vcmp.lt.s32.totalorder %v454, %v455
    %v457 = vsel %vm456, %v454, %v455
    %v458 = vrot.slane %v457, 2
    %vm459 = vcmp.lt.s32.totalorder %v457, %v458
    %v460 = vsel %vm459, %v457, %v458
    %v461 = vrot.slane %v460, 1
    %vm462 = vcmp.lt.s32.totalorder %v460, %v461
    %v463 = vsel %vm462, %v460, %v461
    %v464 = vsub.f32 %v412, %v428
    %v465 = vsub.f32 %v413, %v428
    %v466 = vsub.f32 %v414, %v428
    %v467 = vsub.f32 %v415, %v428
    %v468 = vmul.f32 %v464, 1.442695
    %v469 = vpow.pop %v468
    %v470 = vmul.f32 %v465, 1.442695
    %v471 = vpow.pop %v470
    %v472 = vmul.f32 %v466, 1.442695
    %v473 = vpow.pop %v472
    %v474 = vmul.f32 %v467, 1.442695
    %v475 = vpow.pop %v474
    %v476 = vsel %vm66, %v469, 0.0
    %v477 = vsel %vm66, %v471, 0.0
    %v478 = vadd.f32 %v476, %v477
    %v479 = vsel %vm66, %v473, 0.0
    %v480 = vadd.f32 %v478, %v479
    %v481 = vsel %vm70, %v475, 0.0
    %v482 = vadd.f32 %v480, %v481
    %v483 = vrot.slane %v482, 4
    %v484 = vadd.f32 %v482, %v483
    %v485 = vrot.slane %v484, 2
    %v486 = vadd.f32 %v484, %v485
    %v487 = vrot.slane %v486, 1
    %v488 = vadd.f32 %v486, %v487
    %v489 = vlog2.pop %v488
    %v490 = vmul.f32 %v489, 0.6931472
    %v491 = vadd.f32 %v490, %v428
    %v492 = vld [vmem:[%s1 + $0x3] sm:$0x1]
    %v493 = vperm.slane %v492, 0
    %vm494 = vcmp.eq.s32.totalorder %v20, %v493
    %vm495 = vcmp.eq.s32.totalorder %v21, %v493
    %vm496 = vcmp.eq.s32.totalorder %v22, %v493
    %vm497 = vcmp.eq.s32.totalorder %v23, %v493
    %v498 = vsel %vm494, %v15, 0.0
    %v499 = vsel %vm495, %v16, 0.0
    %v500 = vsel %vm496, %v17, 0.0
    %v501 = vsel %vm497, %v18, 0.0
    %v502 = vsel %vm66, %v498, 0.0
    %v503 = vsel %vm66, %v499, 0.0
    %v504 = vadd.f32 %v502, %v503
    %v505 = vsel %vm66, %v500, 0.0
    %v506 = vadd.f32 %v504, %v505
    %v507 = vsel %vm70, %v501, 0.0
    %v508 = vadd.f32 %v506, %v507
    %v509 = vrot.slane %v508, 4
    %v510 = vadd.f32 %v508, %v509
    %v511 = vrot.slane %v510, 2
    %v512 = vadd.f32 %v510, %v511
    %v513 = vrot.slane %v512, 1
    %v514 = vadd.f32 %v512, %v513
    %v515 = vsub.f32 %v491, %v514
    %v516 = vmul.f32 %v515, 0.125
    %vm517 = vcmp.eq.s32.totalorder %v20, %v463
    %vm518 = vcmp.eq.s32.totalorder %v21, %v463
    %vm519 = vcmp.eq.s32.totalorder %v22, %v463
    %vm520 = vcmp.eq.s32.totalorder %v23, %v463
    %v521 = vsel %vm517, %v33, 0.0
    %v522 = vsel %vm518, %v38, 0.0
    %v523 = vsel %vm519, %v43, 0.0
    %v524 = vsel %vm520, %v48, 0.0
    %v525 = vsel %vm66, %v521, 0.0
    %v526 = vsel %vm66, %v522, 0.0
    %v527 = vadd.f32 %v525, %v526
    %v528 = vsel %vm66, %v523, 0.0
    %v529 = vadd.f32 %v527, %v528
    %v530 = vsel %vm70, %v524, 0.0
    %v531 = vadd.f32 %v529, %v530
    %v532 = vrot.slane %v531, 4
    %v533 = vadd.f32 %v531, %v532
    %v534 = vrot.slane %v533, 2
    %v535 = vadd.f32 %v533, %v534
    %v536 = vrot.slane %v535, 1
    %v537 = vadd.f32 %v535, %v536
    %v538 = vcvt.s32.f32 %v319
    %vm539 = vcmp.ne.f32.partialorder %v537, %v538
    %v540 = vsel %vm539, 2.7182817, 0.0
    %v541 = vadd.f32 %v540, %v516
    %v542 = vmul.f32 %v541, 0.1
    %v543 = vadd.f32 %v399, %v542
    %s544 = smul.u32 0, 8
    %v545 = vstv %s544
    %v546 = vadd.s32 %v545, %v25
    %vm547 = vcmp.lt.s32.totalorder %v546, 8
    %v548 = vsel %vm547, %v543, 0.0
    %vm549 = vcmask 57344
    %550 = vst.msk [vmem:[#allocation2] sm:$0x1] %vm549, %v548
    // Predicated region
    $region14: #{tpu_custom_call.1} parent=1 // pred_check
      _
    $region15: #{tpu_custom_call.1} parent=1 // pred_check_branch
      %552 = sbr.rel (0) target = $region17
    $region16: #{tpu_custom_call.1} parent=1 // pred_region
      %554 = vsyncadd [#allocation3], 0
      %s556 = sshll.u32 [#allocation2], 4
      %s557 = int_to_ptr.vmem [resolvable:$true] %s556
      %s558 = sshll.u32 %s3, 4
      %s559 = int_to_ptr.hbm [resolvable:$true] %s558
      %561 = dma.vmem_to_hbm [thread:$0]  %s557, 16, %s559, [#allocation3]
    $region17: #{tpu_custom_call.1} parent=1 // pred_fallthru
      _
    // Predicated region
    $region18: #{tpu_custom_call.1} parent=1 // pred_check
      _
    $region19: #{tpu_custom_call.1} parent=1 // pred_check_branch
      %563 = sbr.rel (0) target = $region21
    $region20: #{tpu_custom_call.1} parent=1 // pred_region
      %565 = dma.done [#allocation3], 16
    $region21: #{tpu_custom_call.1} parent=1 // pred_fallthru
      _
    %566 = vsyncpa [#allocation3], 1

</llo_original>
